<compile_context>
chip_gen: v7x
topology: tpu7x:2x2x1
jax: 0.10.0
libtpu: 0.0.40
codegen_flags: <defaults>
</compile_context>

<pallas_src>
import functools

import jax
import jax.numpy as jnp
from jax.experimental import pallas as pl
from jax.experimental.pallas import tpu as pltpu


def _part_att_kernel(x_ref, w1_ref, b1_ref, w2_ref, b2_ref, sel_ref, o_ref, *, C, P):
    # x_ref  : (Nb, C, TV)   activations, T*V on lanes (lane-dense)
    # w1_ref : (C, Ci)       conv1 weight with BN scale folded into columns
    # b1_ref : (1, Ci)       conv1 bias folded through BN (shift)
    # w2_ref : (Ci, P*C)     conv2 weight, part-major output layout (lane l = p*C + c)
    # b2_ref : (1, P*C)      conv2 bias, part-major
    # sel_ref: (P, TV)       sel[p, t*V + v] = 1.0 iff joint v belongs to part p
    # o_ref  : (Nb, C, TV)
    x = x_ref[...]                                            # (Nb, C, TV)

    # AdaptiveAvgPool2d(1): mean over (T, V) == mean over the TV lane axis.
    pooled = jnp.mean(x, axis=-1)                             # (Nb, C)

    # 1x1 conv (C -> Ci) with folded eval-mode BN, then ReLU.
    h = jnp.dot(pooled, w1_ref[...], preferred_element_type=jnp.float32)
    h = jnp.maximum(h + b1_ref[...], 0.0)                     # (Nb, Ci)

    # 1x1 conv (Ci -> C*P) as a single lane-dense MXU matmul (part-major lanes).
    logits = jnp.dot(h, w2_ref[...], preferred_element_type=jnp.float32) + b2_ref[...]
    PC = P * C                                                # (Nb, P*C)

    if P & (P - 1) == 0:
        # Grouped (per-channel, over-parts) softmax with log2(P) lane rotations:
        # rolling by C lanes aligns the same channel of the neighbouring part
        # (wrap-around stays on the same channel since the lane extent is P*C).
        m = logits
        s = C
        while s < PC:
            m = jnp.maximum(m, pltpu.roll(m, shift=s, axis=1))
            s *= 2
        e = jnp.exp(logits - m)
        d = e
        s = C
        while s < PC:
            d = d + pltpu.roll(d, shift=s, axis=1)
            s *= 2
        att = e * (1.0 / d)                                   # exact divide (tiny)
        att_p = [att[:, p * C:(p + 1) * C] for p in range(P)]  # P x (Nb, C)
    else:
        # Generic fallback for non-power-of-two part counts.
        chunks = [logits[:, p * C:(p + 1) * C] for p in range(P)]
        m = chunks[0]
        for p in range(1, P):
            m = jnp.maximum(m, chunks[p])
        e = [jnp.exp(t - m) for t in chunks]
        d = e[0]
        for p in range(1, P):
            d = d + e[p]
        inv = 1.0 / d
        att_p = [t * inv for t in e]

    # index_select(3, joints) + expand over T, fused: each part's attention is
    # broadcast onto its joints (tiled over T) via the constant one-hot rows.
    # NOTE: in the full model the consumer multiply (x * att) should be fused
    # here (x is already in VMEM), which would halve end-to-end HBM traffic.
    sel = sel_ref[...]                                        # (P, TV)
    acc = att_p[0][:, :, None] * sel[0:1, :][None, :, :]
    for p in range(1, P):
        acc = acc + att_p[p][:, :, None] * sel[p:p + 1, :][None, :, :]
    o_ref[...] = acc                                          # (Nb, C, TV)


def _choose_block_n(N, per_sample_bytes, max_block=64, target_bytes=2 << 20):
    """Largest divisor of N that (a) keeps the block <= ~2 MiB and <= max_block
    samples (VMEM-safe on v5e/v6e/v7x) and (b) leaves >= 2 grid steps when
    N >= 2 so the parallel batch axis can use both v7x TensorCores."""
    cap = max(1, min(max_block, target_bytes // max(per_sample_bytes, 1)))
    if N >= 2:
        cap = min(cap, N // 2)
    cap = max(1, min(cap, N))
    best = 1
    for d in range(1, cap + 1):
        if N % d == 0:
            best = d
    return best


def part_att(x_nchw, kparams, *, block_n=None):
    """x_nchw: (N, C, T, V) float32 (PyTorch NCHW). Returns attention map (N, C, T, V)."""
    N, C, T, V = x_nchw.shape
    TV = T * V
    Ci = kparams["w1"].shape[1]
    PC = kparams["w2"].shape[1]
    P = PC // C

    per_sample_bytes = C * TV * 4
    if block_n is None:
        block_n = _choose_block_n(N, per_sample_bytes)
    block_n = max(1, min(block_n, N))
    assert N % block_n == 0, "batch must be divisible by block_n"

    # Free contiguous view: lane dimension becomes T*V (lane-dense in-kernel).
    x = x_nchw.reshape(N, C, TV)

    kernel = functools.partial(_part_att_kernel, C=C, P=P)

    # Pure HBM-streaming kernel: read x + write same-size attention map.
    cost = pl.CostEstimate(
        flops=int(N * (C * TV + 2 * C * Ci + 2 * Ci * PC + 6 * PC + 2 * P * C * TV)),
        transcendentals=int(N * PC),
        bytes_accessed=int(2 * N * C * TV * 4
                           + 4 * (C * Ci + Ci + Ci * PC + PC + P * TV)),
    )

    out = pl.pallas_call(
        kernel,
        out_shape=jax.ShapeDtypeStruct((N, C, TV), jnp.float32),
        grid_spec=pltpu.PrefetchScalarGridSpec(
            num_scalar_prefetch=0,
            grid=(N // block_n,),
            in_specs=[
                pl.BlockSpec((block_n, C, TV), lambda n: (n, 0, 0)),   # x
                pl.BlockSpec((C, Ci), lambda n: (0, 0)),               # w1 (BN folded)
                pl.BlockSpec((1, Ci), lambda n: (0, 0)),               # b1 (BN folded)
                pl.BlockSpec((Ci, PC), lambda n: (0, 0)),              # w2 part-major
                pl.BlockSpec((1, PC), lambda n: (0, 0)),               # b2 part-major
                pl.BlockSpec((P, TV), lambda n: (0, 0)),               # select + tile-over-T
            ],
            out_specs=pl.BlockSpec((block_n, C, TV), lambda n: (n, 0, 0)),
        ),
        compiler_params=pltpu.CompilerParams(
            dimension_semantics=("parallel",),        # batch blocks are independent
            vmem_limit_bytes=32 * 1024 * 1024,        # headroom on v5e/v6e/v7x
        ),
        cost_estimate=cost,
    )(x, kparams["w1"], kparams["b1"], kparams["w2"], kparams["b2"],
      kparams["sel"])

    return out.reshape(N, C, T, V)


# ---------------------------------------------------------------------------
# Parameter construction / folding (deterministic, in-script).
# ---------------------------------------------------------------------------
def get_corr_joints(parts):
    """Same construction as Part_Att.get_corr_joints."""
    num_joints = sum(len(p) for p in parts)
    return [j for i in range(num_joints) for j in range(len(parts)) if i in parts[j]]


def make_raw_params(key, C, Ci, P):
    ks = jax.random.split(key, 8)
    return {
        "w1": 0.2 * jax.random.normal(ks[0], (C, Ci), jnp.float32),       # (Cin, Cout)
        "b1": 0.05 * jax.random.normal(ks[1], (Ci,), jnp.float32),
        "bn_gamma": 1.0 + 0.1 * jax.random.normal(ks[2], (Ci,), jnp.float32),
        "bn_beta": 0.1 * jax.random.normal(ks[3], (Ci,), jnp.float32),
        "bn_mean": 0.1 * jax.random.normal(ks[4], (Ci,), jnp.float32),
        "bn_var": jnp.abs(jax.random.normal(ks[5], (Ci,), jnp.float32)) + 0.5,
        "w2": 0.2 * jax.random.normal(ks[6], (Ci, C * P), jnp.float32),    # (Cin, Cout)
        "b2": 0.05 * jax.random.normal(ks[7], (C * P,), jnp.float32),
    }


def prep_kernel_params(raw, parts, C, Ci, T, V, eps=1e-5):
    P = len(parts)
    # The one-hot select/expand fusion assumes each joint belongs to exactly
    # one part (an exact partition), matching index_select semantics.
    flat = sorted(j for part in parts for j in part)
    assert flat == list(range(V)), "parts must exactly partition the V joints"

    # Fold eval-mode BatchNorm of conv1 into weight columns + a single shift.
    scale = raw["bn_gamma"] / jnp.sqrt(raw["bn_var"] + eps)                # (Ci,)
    w1 = raw["w1"] * scale[None, :]                                        # (C, Ci)
    b1 = (raw["bn_beta"] + (raw["b1"] - raw["bn_mean"]) * scale)[None, :]  # (1, Ci)

    # Regroup conv2 part-major so the kernel's single matmul output has
    # lane index l = p*C + c (orig output channel o = c*P + p).
    w2 = raw["w2"].reshape(Ci, C, P).transpose(0, 2, 1).reshape(Ci, P * C)  # (Ci, P*C)
    b2 = raw["b2"].reshape(C, P).T.reshape(1, P * C)                        # (1, P*C)

    # sel[p, t*V + v] = 1 iff joint v belongs to part p (index_select + expand over T).
    joints = jnp.asarray(get_corr_joints(parts), jnp.int32)                # (V,)
    sel_v = (joints[None, :] ==
             jnp.arange(P, dtype=jnp.int32)[:, None]).astype(jnp.float32)  # (P, V)
    sel = jnp.tile(sel_v, (1, T))                                          # (P, T*V)
    return {"w1": w1, "b1": b1, "w2": w2, "b2": b2, "sel": sel}


def reference(x, raw, parts, eps=1e-5):
    """Pure-JAX replica of Part_Att.forward (eval-mode BN, unfolded params)."""
    N, C, T, V = x.shape
    P = len(parts)
    pooled = jnp.mean(x, axis=(2, 3))                                      # AdaptiveAvgPool2d(1)
    h = pooled @ raw["w1"] + raw["b1"]
    h = (h - raw["bn_mean"]) / jnp.sqrt(raw["bn_var"] + eps) * raw["bn_gamma"] + raw["bn_beta"]
    h = jnp.maximum(h, 0.0)
    logits = h @ raw["w2"] + raw["b2"]                                     # (N, C*P)
    att = jax.nn.softmax(logits.reshape(N, C, P), axis=-1)                 # softmax(dim=3)
    joints = jnp.asarray(get_corr_joints(parts), jnp.int32)
    att_v = att[:, :, joints]                                              # index_select(3, joints)
    return jnp.broadcast_to(att_v[:, :, None, :], (N, C, T, V))            # expand_as(x)


if __name__ == "__main__":
    # Module config: channel=32, reduct_ratio=4, bias=True,
    # parts = 4 body parts covering V=16 joints; input (N, C, T, V) = (2, 32, 8, 16).
    N, C, T, V = 2, 32, 8, 16
    reduct_ratio = 4
    Ci = C // reduct_ratio
    parts = ((0, 1, 2, 3), (4, 5, 6, 7, 8), (9, 10, 11), (12, 13, 14, 15))
    P = len(parts)

    key = jax.random.PRNGKey(0)
    kx, kp = jax.random.split(key)
    x = jax.random.normal(kx, (N, C, T, V), jnp.float32)

    raw = make_raw_params(kp, C, Ci, P)
    kparams = prep_kernel_params(raw, parts, C, Ci, T, V)

    ref = reference(x, raw, parts)

    out = part_att(x, kparams)
    out = jax.block_until_ready(out)

    assert out.shape == (N, C, T, V)
    assert jnp.allclose(out, ref, rtol=1e-5, atol=1e-5), "mismatch vs reference"

    print("KERNEL_OK")
</pallas_src>

<mosaic_0001>
module attributes {stable_mosaic.version = 11 : i64} {
  func.func @_part_att_kernel(%arg0: i32, %arg1: memref<1x32x128xf32, #tpu.memory_space<vmem>>, %arg2: memref<32x8xf32, #tpu.memory_space<vmem>>, %arg3: memref<1x8xf32, #tpu.memory_space<vmem>>, %arg4: memref<8x128xf32, #tpu.memory_space<vmem>>, %arg5: memref<1x128xf32, #tpu.memory_space<vmem>>, %arg6: memref<4x128xf32, #tpu.memory_space<vmem>>, %arg7: memref<1x32x128xf32, #tpu.memory_space<vmem>>) attributes {dimension_semantics = [#tpu.dimension_semantics<parallel>], iteration_bounds = array<i64: 2>, scalar_prefetch = 0 : i64, scratch_operands = 0 : i64, tpu.core_type = #tpu.core_type<tc>, window_params = [{transform_indices = @transform_0, window_bounds = array<i64: 1, 32, 128>}, {pipeline_mode = #tpu.pipeline_mode<synchronous>, transform_indices = @transform_1, window_bounds = array<i64: 32, 8>}, {pipeline_mode = #tpu.pipeline_mode<synchronous>, transform_indices = @transform_2, window_bounds = array<i64: 1, 8>}, {pipeline_mode = #tpu.pipeline_mode<synchronous>, transform_indices = @transform_3, window_bounds = array<i64: 8, 128>}, {pipeline_mode = #tpu.pipeline_mode<synchronous>, transform_indices = @transform_4, window_bounds = array<i64: 1, 128>}, {pipeline_mode = #tpu.pipeline_mode<synchronous>, transform_indices = @transform_5, window_bounds = array<i64: 4, 128>}, {transform_indices = @transform_6, window_bounds = array<i64: 1, 32, 128>}]} {
    %c0 = arith.constant 0 : index
    %c0_0 = arith.constant 0 : index
    %c0_1 = arith.constant 0 : index
    %0 = vector.load %arg1[%c0, %c0_0, %c0_1] : memref<1x32x128xf32, #tpu.memory_space<vmem>>, vector<1x32x128xf32>
    %cst = arith.constant dense<0.000000e+00> : vector<1x32xf32>
    %1 = vector.multi_reduction <add>, %0, %cst [2] : vector<1x32x128xf32> to vector<1x32xf32>
    %cst_2 = arith.constant 1.280000e+02 : f32
    %2 = vector.broadcast %cst_2 : f32 to vector<1x32xf32>
    %3 = arith.divf %1, %2 : vector<1x32xf32>
    %c0_3 = arith.constant 0 : index
    %c0_4 = arith.constant 0 : index
    %4 = vector.load %arg2[%c0_3, %c0_4] : memref<32x8xf32, #tpu.memory_space<vmem>>, vector<32x8xf32>
    %cst_5 = arith.constant dense<0.000000e+00> : vector<1x8xf32>
    %5 = tpu.matmul %3, %4, %cst_5 {dimension_numbers = #tpu.dot_dimension_numbers<[1], [0], [0], [1], [0, 0, 1, 1], [], []>} : vector<1x32xf32>, vector<32x8xf32>, vector<1x8xf32> -> vector<1x8xf32>
    %c0_6 = arith.constant 0 : index
    %c0_7 = arith.constant 0 : index
    %6 = vector.load %arg3[%c0_6, %c0_7] : memref<1x8xf32, #tpu.memory_space<vmem>>, vector<1x8xf32>
    %7 = arith.addf %5, %6 : vector<1x8xf32>
    %cst_8 = arith.constant 0.000000e+00 : f32
    %8 = vector.broadcast %cst_8 : f32 to vector<1x8xf32>
    %9 = arith.maximumf %7, %8 : vector<1x8xf32>
    %c0_9 = arith.constant 0 : index
    %c0_10 = arith.constant 0 : index
    %10 = vector.load %arg4[%c0_9, %c0_10] : memref<8x128xf32, #tpu.memory_space<vmem>>, vector<8x128xf32>
    %cst_11 = arith.constant dense<0.000000e+00> : vector<1x128xf32>
    %11 = tpu.matmul %9, %10, %cst_11 {dimension_numbers = #tpu.dot_dimension_numbers<[1], [0], [0], [1], [0, 0, 1, 1], [], []>} : vector<1x8xf32>, vector<8x128xf32>, vector<1x128xf32> -> vector<1x128xf32>
    %c0_12 = arith.constant 0 : index
    %c0_13 = arith.constant 0 : index
    %12 = vector.load %arg5[%c0_12, %c0_13] : memref<1x128xf32, #tpu.memory_space<vmem>>, vector<1x128xf32>
    %13 = arith.addf %11, %12 : vector<1x128xf32>
    %c32_i32 = arith.constant 32 : i32
    %14 = tpu.dynamic_rotate %13 by %c32_i32 dim 1 : vector<1x128xf32>, i32 -> vector<1x128xf32>
    %15 = arith.maximumf %13, %14 : vector<1x128xf32>
    %c64_i32 = arith.constant 64 : i32
    %16 = tpu.dynamic_rotate %15 by %c64_i32 dim 1 : vector<1x128xf32>, i32 -> vector<1x128xf32>
    %17 = arith.maximumf %15, %16 : vector<1x128xf32>
    %18 = arith.subf %13, %17 : vector<1x128xf32>
    %19 = math.exp %18 : vector<1x128xf32>
    %c32_i32_14 = arith.constant 32 : i32
    %20 = tpu.dynamic_rotate %19 by %c32_i32_14 dim 1 : vector<1x128xf32>, i32 -> vector<1x128xf32>
    %21 = arith.addf %19, %20 : vector<1x128xf32>
    %c64_i32_15 = arith.constant 64 : i32
    %22 = tpu.dynamic_rotate %21 by %c64_i32_15 dim 1 : vector<1x128xf32>, i32 -> vector<1x128xf32>
    %23 = arith.addf %21, %22 : vector<1x128xf32>
    %cst_16 = arith.constant 1.000000e+00 : f32
    %24 = vector.broadcast %cst_16 : f32 to vector<1x128xf32>
    %25 = arith.divf %24, %23 : vector<1x128xf32>
    %26 = arith.mulf %19, %25 : vector<1x128xf32>
    %27 = vector.extract_strided_slice %26 {offsets = [0, 0], sizes = [1, 32], strides = [1, 1]} : vector<1x128xf32> to vector<1x32xf32>
    %28 = vector.extract_strided_slice %26 {offsets = [0, 32], sizes = [1, 32], strides = [1, 1]} : vector<1x128xf32> to vector<1x32xf32>
    %29 = vector.extract_strided_slice %26 {offsets = [0, 64], sizes = [1, 32], strides = [1, 1]} : vector<1x128xf32> to vector<1x32xf32>
    %30 = vector.extract_strided_slice %26 {offsets = [0, 96], sizes = [1, 32], strides = [1, 1]} : vector<1x128xf32> to vector<1x32xf32>
    %c0_17 = arith.constant 0 : index
    %c0_18 = arith.constant 0 : index
    %31 = vector.load %arg6[%c0_17, %c0_18] : memref<4x128xf32, #tpu.memory_space<vmem>>, vector<4x128xf32>
    %32 = vector.shape_cast %27 : vector<1x32xf32> to vector<1x32x1xf32>
    %33 = vector.extract_strided_slice %31 {offsets = [0, 0], sizes = [1, 128], strides = [1, 1]} : vector<4x128xf32> to vector<1x128xf32>
    %34 = vector.shape_cast %33 : vector<1x128xf32> to vector<1x1x128xf32>
    %35 = vector.broadcast %32 : vector<1x32x1xf32> to vector<1x32x128xf32>
    %36 = vector.broadcast %34 : vector<1x1x128xf32> to vector<1x32x128xf32>
    %37 = arith.mulf %35, %36 : vector<1x32x128xf32>
    %38 = vector.shape_cast %28 : vector<1x32xf32> to vector<1x32x1xf32>
    %39 = vector.extract_strided_slice %31 {offsets = [1, 0], sizes = [1, 128], strides = [1, 1]} : vector<4x128xf32> to vector<1x128xf32>
    %40 = vector.shape_cast %39 : vector<1x128xf32> to vector<1x1x128xf32>
    %41 = vector.broadcast %38 : vector<1x32x1xf32> to vector<1x32x128xf32>
    %42 = vector.broadcast %40 : vector<1x1x128xf32> to vector<1x32x128xf32>
    %43 = arith.mulf %41, %42 : vector<1x32x128xf32>
    %44 = arith.addf %37, %43 : vector<1x32x128xf32>
    %45 = vector.shape_cast %29 : vector<1x32xf32> to vector<1x32x1xf32>
    %46 = vector.extract_strided_slice %31 {offsets = [2, 0], sizes = [1, 128], strides = [1, 1]} : vector<4x128xf32> to vector<1x128xf32>
    %47 = vector.shape_cast %46 : vector<1x128xf32> to vector<1x1x128xf32>
    %48 = vector.broadcast %45 : vector<1x32x1xf32> to vector<1x32x128xf32>
    %49 = vector.broadcast %47 : vector<1x1x128xf32> to vector<1x32x128xf32>
    %50 = arith.mulf %48, %49 : vector<1x32x128xf32>
    %51 = arith.addf %44, %50 : vector<1x32x128xf32>
    %52 = vector.shape_cast %30 : vector<1x32xf32> to vector<1x32x1xf32>
    %53 = vector.extract_strided_slice %31 {offsets = [3, 0], sizes = [1, 128], strides = [1, 1]} : vector<4x128xf32> to vector<1x128xf32>
    %54 = vector.shape_cast %53 : vector<1x128xf32> to vector<1x1x128xf32>
    %55 = vector.broadcast %52 : vector<1x32x1xf32> to vector<1x32x128xf32>
    %56 = vector.broadcast %54 : vector<1x1x128xf32> to vector<1x32x128xf32>
    %57 = arith.mulf %55, %56 : vector<1x32x128xf32>
    %58 = arith.addf %51, %57 : vector<1x32x128xf32>
    %c0_19 = arith.constant 0 : index
    %c0_20 = arith.constant 0 : index
    %c0_21 = arith.constant 0 : index
    %59 = vector.load %arg7[%c0_19, %c0_20, %c0_21] : memref<1x32x128xf32, #tpu.memory_space<vmem>>, vector<1x32x128xf32>
    tpu.vector_store %arg7[%c0_19, %c0_20, %c0_21], %58 {strides = array<i32>} : memref<1x32x128xf32, #tpu.memory_space<vmem>>, vector<1x32x128xf32>,
    return
  }
  func.func @transform_0(%arg0: i32) -> (i32, i32, i32) {
    %c0_i32 = arith.constant 0 : i32
    %c0_i32_0 = arith.constant 0 : i32
    %c0_i32_1 = arith.constant 0 : i32
    return %arg0, %c0_i32, %c0_i32_0 : i32, i32, i32
  }
  func.func @transform_1(%arg0: i32) -> (i32, i32) {
    %c0_i32 = arith.constant 0 : i32
    %c0_i32_0 = arith.constant 0 : i32
    %c0_i32_1 = arith.constant 0 : i32
    return %c0_i32, %c0_i32_0 : i32, i32
  }
  func.func @transform_2(%arg0: i32) -> (i32, i32) {
    %c0_i32 = arith.constant 0 : i32
    %c0_i32_0 = arith.constant 0 : i32
    %c0_i32_1 = arith.constant 0 : i32
    return %c0_i32, %c0_i32_0 : i32, i32
  }
  func.func @transform_3(%arg0: i32) -> (i32, i32) {
    %c0_i32 = arith.constant 0 : i32
    %c0_i32_0 = arith.constant 0 : i32
    %c0_i32_1 = arith.constant 0 : i32
    return %c0_i32, %c0_i32_0 : i32, i32
  }
  func.func @transform_4(%arg0: i32) -> (i32, i32) {
    %c0_i32 = arith.constant 0 : i32
    %c0_i32_0 = arith.constant 0 : i32
    %c0_i32_1 = arith.constant 0 : i32
    return %c0_i32, %c0_i32_0 : i32, i32
  }
  func.func @transform_5(%arg0: i32) -> (i32, i32) {
    %c0_i32 = arith.constant 0 : i32
    %c0_i32_0 = arith.constant 0 : i32
    %c0_i32_1 = arith.constant 0 : i32
    return %c0_i32, %c0_i32_0 : i32, i32
  }
  func.func @transform_6(%arg0: i32) -> (i32, i32, i32) {
    %c0_i32 = arith.constant 0 : i32
    %c0_i32_0 = arith.constant 0 : i32
    %c0_i32_1 = arith.constant 0 : i32
    return %arg0, %c0_i32, %c0_i32_0 : i32, i32, i32
  }
}

</mosaic_0001>

<llo_original>
// kernel: tpu_custom_call.1
$region0: #{tpu_custom_call.1}
  #allocation0 [shape = 'u32[]', space=smem, size = 0x4, offset = 0x4, fixed_abs, tag = 'smem constant byte address 0x4 - core index']
  #allocation1 [shape = 'u32[144,128]{1,0:T(1,128)}', space=vmem, size = 0x12000, scoped, tag = 'internal scratch']
  %s0 = inlined_call_operand.hbm [shape: f32[2,32,128], index: 0, kind: input, shape index: {}]
  %s1 = inlined_call_operand.vmem [shape: f32[32,8], index: 1, kind: input, shape index: {}]
  %s2 = inlined_call_operand.vmem [shape: f32[1,8], index: 2, kind: input, shape index: {}]
  %s3 = inlined_call_operand.vmem [shape: f32[8,128], index: 3, kind: input, shape index: {}]
  %s4 = inlined_call_operand.vmem [shape: f32[1,128], index: 4, kind: input, shape index: {}]
  %s5 = inlined_call_operand.vmem [shape: f32[4,128], index: 5, kind: input, shape index: {}]
  %s6 = inlined_call_operand.hbm [shape: f32[2,32,128], index: 6, kind: output, shape index: {}]
  %s7 = sld [smem:[#allocation0]]
  $region61: #{tpu_custom_call.1} parent=0
    _
  %s9 = ssub.s32 1, %s7
  %s10 = scalar_select 0, %s9, %s7
  $region1: #{tpu_custom_call.1} parent=0
    #allocation2 [shape = 'u8[32768]{0}', space=vmem, size = 0x8000, scoped, tag = 'input window, operand 0']
    #allocation3 [shape = 's32[2]{0}', space=sflag, size = 0x8, scoped, tag = 'scoped memory for tpu_custom_call.1']
    #allocation4 [shape = 's32[2]{0}', space=sflag, size = 0x8, scoped, tag = 'scoped memory for tpu_custom_call.1']
    #allocation5 [shape = 'u8[32768]{0}', space=vmem, size = 0x8000, scoped, tag = 'output window, operand 0']
    %11 = vsyncpa [#allocation3], 0
    %s12 = scalar_lea.sflag [#allocation3], 1
    %13 = vsyncpa %s12, 0
    %14 = vsyncpa [#allocation4], 0
    %s15 = scalar_lea.sflag [#allocation4], 1
    %16 = vsyncpa %s15, 0
    loop: start=0, step=1, limit=4
    $region2: #{tpu_custom_call.1} parent=1 // loop_pre_header
      _
    $region3: #{tpu_custom_call.1} parent=1 // loop_header
      %s18 = sphi 0, %s22
      %p19 = scmp.ge.s32.totalorder %s18, 4
      %s28 = sphi 0, %s30
      %s31 = sphi 0, %s28
      %s32 = sphi 0, %s31
      %s48 = sphi 0, %s32
      %s52 = sphi 0, %s52
      %s54 = sphi 0, %s52
      %s55 = sphi 0, %s54
      %s69 = sphi 0, %s55
      %s73 = sphi 0, %s73
      %s75 = sphi 0, %s73
      %s76 = sphi 0, %s75
      %s90 = sphi 0, %s76
      %s94 = sphi 0, %s94
      %s96 = sphi 0, %s94
      %s97 = sphi 0, %s96
      %s111 = sphi 0, %s97
      %s115 = sphi 0, %s115
      %s117 = sphi 0, %s115
      %s118 = sphi 0, %s117
      %s132 = sphi 0, %s118
      %s136 = sphi 0, %s136
      %s138 = sphi 0, %s136
      %s139 = sphi 0, %s138
      %s153 = sphi 0, %s139
      %s159 = sphi 0, %s161
      %s162 = sphi 0, %s159
      %s163 = sphi 0, %s162
      %s179 = sphi 0, %s163
    $region4: #{tpu_custom_call.1} parent=1 // loop_header_branch
      %21 = sbr.rel (%p19) target = $region8
    $region5: #{tpu_custom_call.1} parent=1 // loop_body
      %s23 = ssub.s32 %s18, 1
      %s24 = ssub.s32 %s18, 2
      %s25 = sadd.s32 %s18, 1
      %s26 = ssub.s32 %s18, %s25
      %p27 = scmp.eq.s32.totalorder %s26, 0
      %s29 = sadd.s32 %s28, 1
      %s30 = scalar_select %p27, %s28, %s29
      %p33 = pneg %p27
      %p34 = scmp.eq.s32.totalorder %s18, 1
      %p35 = por %p33, %p34
      %p36 = scmp.ne.s32.totalorder %s28, %s31
      %p37 = scmp.eq.s32.totalorder %s18, 0
      %p38 = por %p36, %p37
      %p39 = scmp.ne.s32.totalorder %s28, %s31
      %p40 = scmp.eq.s32.totalorder %s23, 1
      %p41 = por %p39, %p40
      %p42 = scmp.ne.s32.totalorder %s31, %s32
      %p43 = scmp.eq.s32.totalorder %s23, 0
      %p44 = por %p42, %p43
      %p45 = scmp.ne.s32.totalorder %s31, %s32
      %p46 = scmp.eq.s32.totalorder %s24, 1
      %p47 = por %p45, %p46
      %p49 = scmp.ne.s32.totalorder %s32, %s48
      %p50 = scmp.eq.s32.totalorder %s24, 0
      %p51 = por %p49, %p50
      %s53 = sadd.s32 %s52, 1
      %p56 = scmp.eq.s32.totalorder %s18, 1
      %p57 = scmp.ne.s32.totalorder %s52, %s54
      %p58 = scmp.eq.s32.totalorder %s18, 0
      %p59 = por %p57, %p58
      %p60 = scmp.ne.s32.totalorder %s52, %s54
      %p61 = scmp.eq.s32.totalorder %s23, 1
      %p62 = por %p60, %p61
      %p63 = scmp.ne.s32.totalorder %s54, %s55
      %p64 = scmp.eq.s32.totalorder %s23, 0
      %p65 = por %p63, %p64
      %p66 = scmp.ne.s32.totalorder %s54, %s55
      %p67 = scmp.eq.s32.totalorder %s24, 1
      %p68 = por %p66, %p67
      %p70 = scmp.ne.s32.totalorder %s55, %s69
      %p71 = scmp.eq.s32.totalorder %s24, 0
      %p72 = por %p70, %p71
      %s74 = sadd.s32 %s73, 1
      %p77 = scmp.eq.s32.totalorder %s18, 1
      %p78 = scmp.ne.s32.totalorder %s73, %s75
      %p79 = scmp.eq.s32.totalorder %s18, 0
      %p80 = por %p78, %p79
      %p81 = scmp.ne.s32.totalorder %s73, %s75
      %p82 = scmp.eq.s32.totalorder %s23, 1
      %p83 = por %p81, %p82
      %p84 = scmp.ne.s32.totalorder %s75, %s76
      %p85 = scmp.eq.s32.totalorder %s23, 0
      %p86 = por %p84, %p85
      %p87 = scmp.ne.s32.totalorder %s75, %s76
      %p88 = scmp.eq.s32.totalorder %s24, 1
      %p89 = por %p87, %p88
      %p91 = scmp.ne.s32.totalorder %s76, %s90
      %p92 = scmp.eq.s32.totalorder %s24, 0
      %p93 = por %p91, %p92
      %s95 = sadd.s32 %s94, 1
      %p98 = scmp.eq.s32.totalorder %s18, 1
      %p99 = scmp.ne.s32.totalorder %s94, %s96
      %p100 = scmp.eq.s32.totalorder %s18, 0
      %p101 = por %p99, %p100
      %p102 = scmp.ne.s32.totalorder %s94, %s96
      %p103 = scmp.eq.s32.totalorder %s23, 1
      %p104 = por %p102, %p103
      %p105 = scmp.ne.s32.totalorder %s96, %s97
      %p106 = scmp.eq.s32.totalorder %s23, 0
      %p107 = por %p105, %p106
      %p108 = scmp.ne.s32.totalorder %s96, %s97
      %p109 = scmp.eq.s32.totalorder %s24, 1
      %p110 = por %p108, %p109
      %p112 = scmp.ne.s32.totalorder %s97, %s111
      %p113 = scmp.eq.s32.totalorder %s24, 0
      %p114 = por %p112, %p113
      %s116 = sadd.s32 %s115, 1
      %p119 = scmp.eq.s32.totalorder %s18, 1
      %p120 = scmp.ne.s32.totalorder %s115, %s117
      %p121 = scmp.eq.s32.totalorder %s18, 0
      %p122 = por %p120, %p121
      %p123 = scmp.ne.s32.totalorder %s115, %s117
      %p124 = scmp.eq.s32.totalorder %s23, 1
      %p125 = por %p123, %p124
      %p126 = scmp.ne.s32.totalorder %s117, %s118
      %p127 = scmp.eq.s32.totalorder %s23, 0
      %p128 = por %p126, %p127
      %p129 = scmp.ne.s32.totalorder %s117, %s118
      %p130 = scmp.eq.s32.totalorder %s24, 1
      %p131 = por %p129, %p130
      %p133 = scmp.ne.s32.totalorder %s118, %s132
      %p134 = scmp.eq.s32.totalorder %s24, 0
      %p135 = por %p133, %p134
      %s137 = sadd.s32 %s136, 1
      %p140 = scmp.eq.s32.totalorder %s18, 1
      %p141 = scmp.ne.s32.totalorder %s136, %s138
      %p142 = scmp.eq.s32.totalorder %s18, 0
      %p143 = por %p141, %p142
      %p144 = scmp.ne.s32.totalorder %s136, %s138
      %p145 = scmp.eq.s32.totalorder %s23, 1
      %p146 = por %p144, %p145
      %p147 = scmp.ne.s32.totalorder %s138, %s139
      %p148 = scmp.eq.s32.totalorder %s23, 0
      %p149 = por %p147, %p148
      %p150 = scmp.ne.s32.totalorder %s138, %s139
      %p151 = scmp.eq.s32.totalorder %s24, 1
      %p152 = por %p150, %p151
      %p154 = scmp.ne.s32.totalorder %s139, %s153
      %p155 = scmp.eq.s32.totalorder %s24, 0
      %p156 = por %p154, %p155
      %s157 = ssub.s32 %s18, %s25
      %p158 = scmp.eq.s32.totalorder %s157, 0
      %s160 = sadd.s32 %s159, 1
      %s161 = scalar_select %p158, %s159, %s160
      %p164 = pneg %p158
      %p165 = scmp.eq.s32.totalorder %s18, 1
      %p166 = por %p164, %p165
      %p167 = scmp.ne.s32.totalorder %s159, %s162
      %p168 = scmp.eq.s32.totalorder %s18, 0
      %p169 = por %p167, %p168
      %p170 = scmp.ne.s32.totalorder %s159, %s162
      %p171 = scmp.eq.s32.totalorder %s23, 1
      %p172 = por %p170, %p171
      %p173 = scmp.ne.s32.totalorder %s162, %s163
      %p174 = scmp.eq.s32.totalorder %s23, 0
      %p175 = por %p173, %p174
      %p176 = scmp.ne.s32.totalorder %s162, %s163
      %p177 = scmp.eq.s32.totalorder %s24, 1
      %p178 = por %p176, %p177
      %p180 = scmp.ne.s32.totalorder %s163, %s179
      %p181 = scmp.eq.s32.totalorder %s24, 0
      %p182 = por %p180, %p181
      %p183 = scmp.le.s32.totalorder 1, %s18
      %p184 = scmp.lt.s32.totalorder %s18, 3
      %p185 = pnand %p183, %p184
      %p186 = pneg %p185
      // Predicated region
      $region9: #{tpu_custom_call.1} parent=5 // pred_check
        _
      $region10: #{tpu_custom_call.1} parent=5 // pred_check_branch
        %188 = sbr.rel (%p185) target = $region12
      $region11: #{tpu_custom_call.1} parent=5 // pred_region
        %s189 = ssub.s32 %s18, 1
        // Predicated region
        $region13: #{tpu_custom_call.1} parent=11 // pred_check
          %p190 = pneg %p65
        $region14: #{tpu_custom_call.1} parent=11 // pred_check_branch
          %192 = sbr.rel (%p190) target = $region16
        $region15: #{tpu_custom_call.1} parent=11 // pred_region
          _
        $region16: #{tpu_custom_call.1} parent=11 // pred_fallthru
          _
        // Predicated region
        $region17: #{tpu_custom_call.1} parent=11 // pred_check
          %p193 = pneg %p86
        $region18: #{tpu_custom_call.1} parent=11 // pred_check_branch
          %195 = sbr.rel (%p193) target = $region20
        $region19: #{tpu_custom_call.1} parent=11 // pred_region
          _
        $region20: #{tpu_custom_call.1} parent=11 // pred_fallthru
          _
        // Predicated region
        $region21: #{tpu_custom_call.1} parent=11 // pred_check
          %p196 = pneg %p107
        $region22: #{tpu_custom_call.1} parent=11 // pred_check_branch
          %198 = sbr.rel (%p196) target = $region24
        $region23: #{tpu_custom_call.1} parent=11 // pred_region
          _
        $region24: #{tpu_custom_call.1} parent=11 // pred_fallthru
          _
        // Predicated region
        $region25: #{tpu_custom_call.1} parent=11 // pred_check
          %p199 = pneg %p128
        $region26: #{tpu_custom_call.1} parent=11 // pred_check_branch
          %201 = sbr.rel (%p199) target = $region28
        $region27: #{tpu_custom_call.1} parent=11 // pred_region
          _
        $region28: #{tpu_custom_call.1} parent=11 // pred_fallthru
          _
        // Predicated region
        $region29: #{tpu_custom_call.1} parent=11 // pred_check
          %p202 = pneg %p149
        $region30: #{tpu_custom_call.1} parent=11 // pred_check_branch
          %204 = sbr.rel (%p202) target = $region32
        $region31: #{tpu_custom_call.1} parent=11 // pred_region
          _
        $region32: #{tpu_custom_call.1} parent=11 // pred_fallthru
          _
      $region12: #{tpu_custom_call.1} parent=5 // pred_fallthru
        _
      %p205 = scmp.lt.s32.totalorder %s18, 2
      // Predicated region
      $region33: #{tpu_custom_call.1} parent=5 // pred_check
        %p206 = pneg %p205
      $region34: #{tpu_custom_call.1} parent=5 // pred_check_branch
        %208 = sbr.rel (%p206) target = $region36
      $region35: #{tpu_custom_call.1} parent=5 // pred_region
        // Predicated region
        $region37: #{tpu_custom_call.1} parent=35 // pred_check
          %p209 = pneg %p38
        $region38: #{tpu_custom_call.1} parent=35 // pred_check_branch
          %211 = sbr.rel (%p209) target = $region40
        $region39: #{tpu_custom_call.1} parent=35 // pred_region
          %s212 = sand.u32 %s28, 1
          %s213 = scalar_lea.sflag [#allocation3], %s212
          %s214 = sand.u32 %s28, 1
          %s215 = smul.addr %s214, 32
          %s216 = scalar_lea.vmem [#allocation2], %s215
          %s218 = ssub.s32 512, 512
          %219 = vsyncadd %s213, %s218
          %s220 = smul.addr %s18, 4
          %s221 = smul.addr %s220, 128
          %s222 = scalar_lea.hbm %s0, %s221
          %s223 = sshll.u32 %s216, 4
          %s224 = int_to_ptr.vmem [resolvable:$true] %s223
          %229 = dma.hbm_to_vmem [thread:$0]  %s222, 512, %s224, %s213, 128, 128, 8
        $region40: #{tpu_custom_call.1} parent=35 // pred_fallthru
          _
      $region36: #{tpu_custom_call.1} parent=5 // pred_fallthru
        _
      %p230 = scmp.le.s32.totalorder 1, %s18
      %p231 = scmp.lt.s32.totalorder %s18, 3
      %p232 = pnand %p230, %p231
      %p233 = pneg %p232
      // Predicated region
      $region41: #{tpu_custom_call.1} parent=5 // pred_check
        _
      $region42: #{tpu_custom_call.1} parent=5 // pred_check_branch
        %235 = sbr.rel (%p232) target = $region44
      $region43: #{tpu_custom_call.1} parent=5 // pred_region
        %s236 = ssub.s32 %s18, 1
        %s237 = sand.u32 %s31, 1
        %s238 = scalar_lea.sflag [#allocation3], %s237
        %s239 = sand.u32 %s31, 1
        %s240 = smul.addr %s239, 32
        %s241 = scalar_lea.vmem [#allocation2], %s240
        // Predicated region
        $region45: #{tpu_custom_call.1} parent=43 // pred_check
          %p242 = pneg %p44
        $region46: #{tpu_custom_call.1} parent=43 // pred_check_branch
          %244 = sbr.rel (%p242) target = $region48
        $region47: #{tpu_custom_call.1} parent=43 // pred_region
          %245 = dma.done %s238, 512
        $region48: #{tpu_custom_call.1} parent=43 // pred_fallthru
          _
        %s246 = sand.u32 %s31, 1
        %s247 = scalar_lea.sflag [#allocation3], %s246
        %s248 = sand.u32 %s31, 1
        %s249 = smul.addr %s248, 32
        %s250 = scalar_lea.vmem [#allocation2], %s249
        %p251 = pneg %p44
        %p252 = pneg %p41
        %p253 = pneg %p65
        %p254 = pneg %p62
        %p255 = pneg %p86
        %p256 = pneg %p83
        %p257 = pneg %p107
        %p258 = pneg %p104
        %p259 = pneg %p128
        %p260 = pneg %p125
        %p261 = pneg %p149
        %p262 = pneg %p146
        %p263 = pneg %p175
        %p264 = pneg %p172
        %s265 = sand.u32 %s162, 1
        %s266 = scalar_lea.sflag [#allocation4], %s265
        %s267 = sand.u32 %s162, 1
        %s268 = smul.addr %s267, 32
        %s269 = scalar_lea.vmem [#allocation5], %s268
        %v270 = vld [vmem:[%s241] sm:$0xff]
        %v271 = vld [vmem:[%s241 + $0x8] sm:$0xff]
        %v272 = vld [vmem:[%s241 + $0x10] sm:$0xff]
        %v273 = vld [vmem:[%s241 + $0x18] sm:$0xff]
        %274 = vadd.xlane.f32.xlu0 %v270
        %v275 = vpop.xlane.xlu0 %274
        %276 = vadd.xlane.f32.xlu0 %v271
        %v277 = vpop.xlane.xlu0 %276
        %278 = vadd.xlane.f32.xlu0 %v272
        %v279 = vpop.xlane.xlu0 %278
        %280 = vadd.xlane.f32.xlu0 %v273
        %v281 = vpop.xlane.xlu0 %280
        %v282 = vrcp.pop 128.0
        %v283 = vmul.f32 %v275, %v282
        %v284 = vmul.f32 %v277, %v282
        %v285 = vmul.f32 %v279, %v282
        %v286 = vmul.f32 %v281, %v282
        %v287 = vld [vmem:[%s1] sm:$0xff]
        %v288 = vld [vmem:[%s1 + $0x8] sm:$0xff]
        %v289 = vld [vmem:[%s1 + $0x10] sm:$0xff]
        %v290 = vld [vmem:[%s1 + $0x18] sm:$0xff]
        %v291 = vld [vmem:[%s2] sm:$0x1]
        %v296 = vlaneseq
        %v297 = vand.u32 %v296, 127
        %v298 = vlaneseq
        %v299 = vshrl.u32 %v298, 7
        %v300 = vsub.s32 %v297, %v299
        %v301 = vrot.slane %v283, %v300
        %v302 = vadd.s32 %v297, 4294967288
        %v303 = vlaneseq
        %v304 = vshrl.u32 %v303, 7
        %v305 = vsub.s32 %v302, %v304
        %v306 = vrot.slane %v284, %v305
        %vm307 = vcmask 130112
        %v308 = vsel %vm307, %v306, %v301
        %v309 = vadd.s32 %v297, 4294967280
        %v310 = vlaneseq
        %v311 = vshrl.u32 %v310, 7
        %v312 = vsub.s32 %v309, %v311
        %v313 = vrot.slane %v285, %v312
        %vm314 = vcmask 195712
        %v315 = vsel %vm314, %v313, %v308
        %v316 = vadd.s32 %v297, 4294967272
        %v317 = vlaneseq
        %v318 = vshrl.u32 %v317, 7
        %v319 = vsub.s32 %v316, %v318
        %v320 = vrot.slane %v286, %v319
        %vm321 = vcmask 261312
        %v322 = vsel %vm321, %v320, %v315
        %vm323 = vcmask 261120
        %v324 = vsel %vm323, %v322, 0
        %326 = vmatprep.subr.mxu0 0.0
        %327 = vmatpush1.msra.mxu0 %v287
        %328 = vmatprep.subr.mxu0 0.0
        %329 = vmatpush1.msra.mxu0 %v288
        %330 = vmatprep.subr.mxu0 0.0
        %331 = vmatpush1.msra.mxu0 %v289
        %332 = vmatprep.subr.mxu0 0.0
        %333 = vmatpush1.msra.mxu0 %v290
        %334 = vmatprep.subr.mxu0 0.0
        %335 = vmatpush1.msra.mxu0 0.0
        %336 = vmatprep.subr.mxu0 0.0
        %337 = vmatpush1.msra.mxu0 0.0
        %338 = vmatprep.subr.mxu0 0.0
        %339 = vmatpush1.msra.mxu0 0.0
        %340 = vmatprep.subr.mxu0 0.0
        %341 = vmatpush1.msra.mxu0 0.0
        %342 = vmatprep.subr.mxu0 0.0
        %343 = vmatpush1.msra.mxu0 0.0
        %344 = vmatprep.subr.mxu0 0.0
        %345 = vmatpush1.msra.mxu0 0.0
        %346 = vmatprep.subr.mxu0 0.0
        %347 = vmatpush1.msra.mxu0 0.0
        %348 = vmatprep.subr.mxu0 0.0
        %349 = vmatpush1.msra.mxu0 0.0
        %350 = vmatprep.subr.mxu0 0.0
        %351 = vmatpush1.msra.mxu0 0.0
        %352 = vmatprep.subr.mxu0 0.0
        %353 = vmatpush1.msra.mxu0 0.0
        %354 = vmatprep.subr.mxu0 0.0
        %355 = vmatpush1.msra.mxu0 0.0
        %356 = vmatprep.subr.mxu0 0.0
        %357 = vmatpush1.msra.mxu0 0.0
        %358 = vmatprep.subr.mxu0 0.0
        %359 = vmatpush1.msra.mxu0 0.0
        %360 = vmatprep.subr.mxu0 0.0
        %361 = vmatpush1.msra.mxu0 0.0
        %362 = vmatprep.subr.mxu0 0.0
        %363 = vmatpush1.msra.mxu0 0.0
        %364 = vmatprep.subr.mxu0 0.0
        %365 = vmatpush1.msra.mxu0 0.0
        %366 = vmatprep.subr.mxu0 0.0
        %367 = vmatpush1.msra.mxu0 0.0
        %368 = vmatprep.subr.mxu0 0.0
        %369 = vmatpush1.msra.mxu0 0.0
        %370 = vmatprep.subr.mxu0 0.0
        %371 = vmatpush1.msra.mxu0 0.0
        %372 = vmatprep.subr.mxu0 0.0
        %373 = vmatpush1.msra.mxu0 0.0
        %374 = vmatprep.subr.mxu0 0.0
        %375 = vmatpush1.msra.mxu0 0.0
        %376 = vmatprep.subr.mxu0 0.0
        %377 = vmatpush1.msra.mxu0 0.0
        %378 = vmatprep.subr.mxu0 0.0
        %379 = vmatpush1.msra.mxu0 0.0
        %380 = vmatprep.subr.mxu0 0.0
        %381 = vmatpush1.msra.mxu0 0.0
        %382 = vmatprep.subr.mxu0 0.0
        %383 = vmatpush1.msra.mxu0 0.0
        %384 = vmatprep.subr.mxu0 0.0
        %385 = vmatpush1.msra.mxu0 0.0
        %386 = vmatprep.subr.mxu0 0.0
        %387 = vmatpush1.msra.mxu0 0.0
        %388 = vmatprep.subr.mxu0 0.0
        %389 = vmatpush1.msra.mxu0 0.0
        %390 = vmatprep.mubr.f32.mxu0 0.0
        %391 = vmatmul.mubr.f32.gmra.mrb[0].mxu0 %v324
        %v392 = vpop.f32.mrb[0].mxu0
        %v393 = vadd.f32 %v291, %v392
        %v394 = vpop.f32.mrb[0].mxu0
        %395 = vdwg.mxu0
        %v396 = vmax.f32 %v393, 0.0
        %v397 = vld [vmem:[%s3] sm:$0xff]
        %v398 = vld [vmem:[%s4] sm:$0x1]
        %vm399 = vcmask 64512
        %v401 = vsel %vm399, %v396, 0
        %403 = vmatprep.subr.mxu0 0.0
        %404 = vmatpush1.msra.mxu0 %v397
        %405 = vmatprep.subr.mxu0 0.0
        %406 = vmatpush1.msra.mxu0 0.0
        %407 = vmatprep.subr.mxu0 0.0
        %408 = vmatpush1.msra.mxu0 0.0
        %409 = vmatprep.subr.mxu0 0.0
        %410 = vmatpush1.msra.mxu0 0.0
        %411 = vmatprep.subr.mxu0 0.0
        %412 = vmatpush1.msra.mxu0 0.0
        %413 = vmatprep.subr.mxu0 0.0
        %414 = vmatpush1.msra.mxu0 0.0
        %415 = vmatprep.subr.mxu0 0.0
        %416 = vmatpush1.msra.mxu0 0.0
        %417 = vmatprep.subr.mxu0 0.0
        %418 = vmatpush1.msra.mxu0 0.0
        %419 = vmatprep.subr.mxu0 0.0
        %420 = vmatpush1.msra.mxu0 0.0
        %421 = vmatprep.subr.mxu0 0.0
        %422 = vmatpush1.msra.mxu0 0.0
        %423 = vmatprep.subr.mxu0 0.0
        %424 = vmatpush1.msra.mxu0 0.0
        %425 = vmatprep.subr.mxu0 0.0
        %426 = vmatpush1.msra.mxu0 0.0
        %427 = vmatprep.subr.mxu0 0.0
        %428 = vmatpush1.msra.mxu0 0.0
        %429 = vmatprep.subr.mxu0 0.0
        %430 = vmatpush1.msra.mxu0 0.0
        %431 = vmatprep.subr.mxu0 0.0
        %432 = vmatpush1.msra.mxu0 0.0
        %433 = vmatprep.subr.mxu0 0.0
        %434 = vmatpush1.msra.mxu0 0.0
        %435 = vmatprep.subr.mxu0 0.0
        %436 = vmatpush1.msra.mxu0 0.0
        %437 = vmatprep.subr.mxu0 0.0
        %438 = vmatpush1.msra.mxu0 0.0
        %439 = vmatprep.subr.mxu0 0.0
        %440 = vmatpush1.msra.mxu0 0.0
        %441 = vmatprep.subr.mxu0 0.0
        %442 = vmatpush1.msra.mxu0 0.0
        %443 = vmatprep.subr.mxu0 0.0
        %444 = vmatpush1.msra.mxu0 0.0
        %445 = vmatprep.subr.mxu0 0.0
        %446 = vmatpush1.msra.mxu0 0.0
        %447 = vmatprep.subr.mxu0 0.0
        %448 = vmatpush1.msra.mxu0 0.0
        %449 = vmatprep.subr.mxu0 0.0
        %450 = vmatpush1.msra.mxu0 0.0
        %451 = vmatprep.subr.mxu0 0.0
        %452 = vmatpush1.msra.mxu0 0.0
        %453 = vmatprep.subr.mxu0 0.0
        %454 = vmatpush1.msra.mxu0 0.0
        %455 = vmatprep.subr.mxu0 0.0
        %456 = vmatpush1.msra.mxu0 0.0
        %457 = vmatprep.subr.mxu0 0.0
        %458 = vmatpush1.msra.mxu0 0.0
        %459 = vmatprep.subr.mxu0 0.0
        %460 = vmatpush1.msra.mxu0 0.0
        %461 = vmatprep.subr.mxu0 0.0
        %462 = vmatpush1.msra.mxu0 0.0
        %463 = vmatprep.subr.mxu0 0.0
        %464 = vmatpush1.msra.mxu0 0.0
        %465 = vmatprep.subr.mxu0 0.0
        %466 = vmatpush1.msra.mxu0 0.0
        %467 = vmatprep.mubr.f32.mxu0 0.0
        %468 = vmatmul.mubr.f32.gmra.mrb[0].mxu0 %v401
        %v469 = vpop.f32.mrb[0].mxu0
        %v470 = vadd.f32 %v398, %v469
        %v471 = vpop.f32.mrb[0].mxu0
        %472 = vdwg.mxu0
        %473 = vrot.lane.b32.xlu0 %v470, 32
        %v474 = vpop.permute.xlu0 %473
        %v475 = vmax.f32 %v470, %v474
        %476 = vrot.lane.b32.xlu0 %v475, 64
        %v477 = vpop.permute.xlu0 %476
        %v478 = vmax.f32 %v475, %v477
        %v479 = vsub.f32 %v470, %v478
        %v480 = vmul.f32 %v479, 1.442695
        %v481 = vpow.pop %v480
        %482 = vrot.lane.b32.xlu0 %v481, 32
        %v483 = vpop.permute.xlu0 %482
        %v484 = vadd.f32 %v481, %v483
        %485 = vrot.lane.b32.xlu0 %v484, 64
        %v486 = vpop.permute.xlu0 %485
        %v487 = vadd.f32 %v484, %v486
        %v488 = vrcp.pop %v487
        %v489 = vmul.f32 1.0, %v488
        %v490 = vmul.f32 %v481, %v489
        %v491 = vld [vmem:[%s5] sm:$0xf]
        %v492 = vlaneseq
        %v493 = vshrl.u32 %v492, 7
        %v494 = vsub.s32 0, %v493
        %v495 = vrot.slane %v490, %v494
        %497 = vbcast.lane.b32.xlu0 %v495, 256
        %v498 = vpop.permute.xlu0 %497
        %s500 = sor.u32 256, 8
        %501 = vbcast.lane.b32.xlu0 %v495, %s500
        %v502 = vpop.permute.xlu0 %501
        %s504 = sor.u32 256, 16
        %505 = vbcast.lane.b32.xlu0 %v495, %s504
        %v506 = vpop.permute.xlu0 %505
        %s508 = sor.u32 256, 24
        %509 = vbcast.lane.b32.xlu0 %v495, %s508
        %v510 = vpop.permute.xlu0 %509
        %v511 = vlaneseq
        %v512 = vshrl.u32 %v511, 7
        %v513 = vsub.s32 0, %v512
        %v514 = vrot.slane %v491, %v513
        %v515 = vmul.f32 %v498, %v514
        %v516 = vmul.f32 %v502, %v514
        %v517 = vmul.f32 %v506, %v514
        %v518 = vmul.f32 %v510, %v514
        %s520 = sor.u32 256, 32
        %521 = vbcast.lane.b32.xlu0 %v495, %s520
        %v522 = vpop.permute.xlu0 %521
        %s524 = sor.u32 256, 40
        %525 = vbcast.lane.b32.xlu0 %v495, %s524
        %v526 = vpop.permute.xlu0 %525
        %s528 = sor.u32 256, 48
        %529 = vbcast.lane.b32.xlu0 %v495, %s528
        %v530 = vpop.permute.xlu0 %529
        %s532 = sor.u32 256, 56
        %533 = vbcast.lane.b32.xlu0 %v495, %s532
        %v534 = vpop.permute.xlu0 %533
        %v535 = vlaneseq
        %v536 = vshrl.u32 %v535, 7
        %v537 = vsub.s32 1, %v536
        %v538 = vrot.slane %v491, %v537
        %v539 = vmul.f32 %v522, %v538
        %v540 = vmul.f32 %v526, %v538
        %v541 = vmul.f32 %v530, %v538
        %v542 = vmul.f32 %v534, %v538
        %v543 = vadd.f32 %v515, %v539
        %v544 = vadd.f32 %v516, %v540
        %v545 = vadd.f32 %v517, %v541
        %v546 = vadd.f32 %v518, %v542
        %s548 = sor.u32 256, 64
        %549 = vbcast.lane.b32.xlu0 %v495, %s548
        %v550 = vpop.permute.xlu0 %549
        %s552 = sor.u32 256, 72
        %553 = vbcast.lane.b32.xlu0 %v495, %s552
        %v554 = vpop.permute.xlu0 %553
        %s556 = sor.u32 256, 80
        %557 = vbcast.lane.b32.xlu0 %v495, %s556
        %v558 = vpop.permute.xlu0 %557
        %s560 = sor.u32 256, 88
        %561 = vbcast.lane.b32.xlu0 %v495, %s560
        %v562 = vpop.permute.xlu0 %561
        %v563 = vlaneseq
        %v564 = vshrl.u32 %v563, 7
        %v565 = vsub.s32 2, %v564
        %v566 = vrot.slane %v491, %v565
        %v567 = vmul.f32 %v550, %v566
        %v568 = vmul.f32 %v554, %v566
        %v569 = vmul.f32 %v558, %v566
        %v570 = vmul.f32 %v562, %v566
        %v571 = vadd.f32 %v543, %v567
        %v572 = vadd.f32 %v544, %v568
        %v573 = vadd.f32 %v545, %v569
        %v574 = vadd.f32 %v546, %v570
        %s576 = sor.u32 256, 96
        %577 = vbcast.lane.b32.xlu0 %v495, %s576
        %v578 = vpop.permute.xlu0 %577
        %s580 = sor.u32 256, 104
        %581 = vbcast.lane.b32.xlu0 %v495, %s580
        %v582 = vpop.permute.xlu0 %581
        %s584 = sor.u32 256, 112
        %585 = vbcast.lane.b32.xlu0 %v495, %s584
        %v586 = vpop.permute.xlu0 %585
        %s588 = sor.u32 256, 120
        %589 = vbcast.lane.b32.xlu0 %v495, %s588
        %v590 = vpop.permute.xlu0 %589
        %v591 = vlaneseq
        %v592 = vshrl.u32 %v591, 7
        %v593 = vsub.s32 3, %v592
        %v594 = vrot.slane %v491, %v593
        %v595 = vmul.f32 %v578, %v594
        %v596 = vmul.f32 %v582, %v594
        %v597 = vmul.f32 %v586, %v594
        %v598 = vmul.f32 %v590, %v594
        %v599 = vadd.f32 %v571, %v595
        %v600 = vadd.f32 %v572, %v596
        %v601 = vadd.f32 %v573, %v597
        %v602 = vadd.f32 %v574, %v598
        %603 = vst [vmem:[%s269] sm:$0xff] %v599
        %604 = vst [vmem:[%s269 + $0x8] sm:$0xff] %v600
        %605 = vst [vmem:[%s269 + $0x10] sm:$0xff] %v601
        %606 = vst [vmem:[%s269 + $0x18] sm:$0xff] %v602
        %s607 = sand.u32 %s162, 1
        %s608 = scalar_lea.sflag [#allocation4], %s607
        %s609 = sand.u32 %s162, 1
        %s610 = smul.addr %s609, 32
        %s611 = scalar_lea.vmem [#allocation5], %s610
        // Predicated region
        $region49: #{tpu_custom_call.1} parent=43 // pred_check
          %p612 = pneg %p172
        $region50: #{tpu_custom_call.1} parent=43 // pred_check_branch
          %614 = sbr.rel (%p612) target = $region52
        $region51: #{tpu_custom_call.1} parent=43 // pred_region
          %s616 = ssub.s32 512, 512
          %617 = vsyncadd %s608, %s616
          %s618 = smul.addr %s23, 4
          %s619 = smul.addr %s618, 128
          %s620 = scalar_lea.hbm %s6, %s619
          %s621 = sshll.u32 %s611, 4
          %s622 = int_to_ptr.vmem [resolvable:$true] %s621
          %627 = dma.vmem_to_hbm [thread:$0]  %s622, 512, %s620, %s608, 128, 128, 8
        $region52: #{tpu_custom_call.1} parent=43 // pred_fallthru
          _
      $region44: #{tpu_custom_call.1} parent=5 // pred_fallthru
        _
      %p628 = scmp.le.s32.totalorder 2, %s18
      // Predicated region
      $region53: #{tpu_custom_call.1} parent=5 // pred_check
        %p629 = pneg %p628
      $region54: #{tpu_custom_call.1} parent=5 // pred_check_branch
        %631 = sbr.rel (%p629) target = $region56
      $region55: #{tpu_custom_call.1} parent=5 // pred_region
        %s632 = ssub.s32 %s18, 2
        // Predicated region
        $region57: #{tpu_custom_call.1} parent=55 // pred_check
          %p633 = pneg %p178
        $region58: #{tpu_custom_call.1} parent=55 // pred_check_branch
          %635 = sbr.rel (%p633) target = $region60
        $region59: #{tpu_custom_call.1} parent=55 // pred_region
          %s636 = sand.u32 %s163, 1
          %s637 = scalar_lea.sflag [#allocation4], %s636
          %s638 = sand.u32 %s163, 1
          %s639 = smul.addr %s638, 32
          %s640 = scalar_lea.vmem [#allocation5], %s639
          %641 = dma.done %s637, 512
        $region60: #{tpu_custom_call.1} parent=55 // pred_fallthru
          _
      $region56: #{tpu_custom_call.1} parent=5 // pred_fallthru
        _
    $region6: #{tpu_custom_call.1} parent=1 // loop_footer
      %s22 = sadd.s32 1, %s18
    $region7: #{tpu_custom_call.1} parent=1 // loop_footer_branch
      %17 = sbr.rel target = $region3
    $region8: #{tpu_custom_call.1} parent=1 // loop_exit
      _
    %642 = vsyncpa [#allocation3], 1
    %s643 = scalar_lea.sflag [#allocation3], 1
    %644 = vsyncpa %s643, 1
    %645 = vsyncpa [#allocation4], 1
    %s646 = scalar_lea.sflag [#allocation4], 1
    %647 = vsyncpa %s646, 1

</llo_original>
